<compile_context>
chip_gen: v7x
topology: tpu7x:2x2x1
jax: 0.10.0
libtpu: 0.0.40
codegen_flags: <defaults>
</compile_context>

<pallas_src>
import functools

import jax
import jax.numpy as jnp
import numpy as np
from jax import lax
from jax.experimental import pallas as pl
from jax.experimental.pallas import tpu as pltpu


def _gram_kernel(x_ref, wc_ref, bc_ref, r_ref, acc_ref, *, n, tn, mxu_dtype):
    # x_ref  : (1, Cin, TN)   spatial tile of one batch element (native x dtype)
    # wc_ref : (C, Cin)       conv weight, 1/sqrt(N) folded in (mxu_dtype)
    # bc_ref : (C, 1)         conv bias,   1/sqrt(N) folded in (f32)
    # r_ref  : (1, C, C)      output sqrt(G + 1e-5) for this batch element (f32)
    # acc_ref: (C, C) f32     Gram accumulator (persists across the k axis)
    k = pl.program_id(1)
    nk = pl.num_programs(1)

    @pl.when(k == 0)
    def _init():
        acc_ref[...] = jnp.zeros_like(acc_ref)

    # 1x1x1 conv == channel matmul. Cast to the MXU feed dtype in-kernel (no
    # wrapper-side HBM copy of x); accumulate in f32; bias + ReLU in f32.
    x = x_ref[0].astype(mxu_dtype)                            # (Cin, TN)
    y = jnp.dot(wc_ref[...], x, preferred_element_type=jnp.float32)
    y = jnp.maximum(y + bc_ref[...], 0.0)                     # (C, TN) f32

    def accumulate(yt):
        yc = yt.astype(mxu_dtype)                             # bf16 MXU feed by default
        acc_ref[...] += lax.dot_general(
            yc, yc,
            dimension_numbers=(((1,), (1,)), ((), ())),
            preferred_element_type=jnp.float32)

    rem = n % tn                                              # valid cols in last tile (0 => full)
    if rem == 0:
        accumulate(y)
    else:
        # Mask only on the last spatial tile: Pallas does not zero-fill the
        # partial last block, so the stale VMEM columns (after the conv bias
        # + ReLU) must not leak into the Gram matrix.
        @pl.when(k < nk - 1)
        def _full():
            accumulate(y)

        @pl.when(k == nk - 1)
        def _tail():
            col = lax.broadcasted_iota(jnp.int32, (1, tn), 1)
            accumulate(jnp.where(col < rem, y, 0.0))

    @pl.when(k == nk - 1)
    def _finalize():
        r_ref[0] = jnp.sqrt(acc_ref[...] + 1e-5)              # G already carries 1/N


def bilinear_classify_block(x, conv_w, conv_b, fc_w, fc_b, *,
                            mxu_dtype=jnp.bfloat16, tile_n=None):
    """x: (B, C_in, T, H, W); returns (B, C_out) float32.

    mxu_dtype=jnp.bfloat16 (default) feeds the conv / Gram MXU contractions in
    bf16 with f32 accumulation; pass jnp.float32 for exact f32 module
    semantics.  x is streamed in its HBM-resident dtype either way.
    """
    B, Cin, T, H, W = x.shape
    Cout = conv_w.shape[0]
    N = T * H * W

    # ---- spatial tile from a bytes budget (per-generation VMEM aware) ----
    try:
        vmem_cap = int(pltpu.get_tpu_info().vmem_capacity_bytes)
    except Exception:
        vmem_cap = 64 * 1024 * 1024                     # conservative (v7x)
    big_vmem = vmem_cap >= 100 * 1024 * 1024            # v5e/v6e (128 MiB) vs v7x (64 MiB)
    x_itemsize = jnp.dtype(x.dtype).itemsize
    x_tile_budget = (4 if big_vmem else 2) * 1024 * 1024   # per x tile (double-buffered)
    y_budget = 8 * 1024 * 1024                              # (C, TN) f32 conv output cap
    if tile_n is None:
        tn = x_tile_budget // max(1, Cin * x_itemsize)
        tn = min(tn, y_budget // max(1, Cout * 4))
    else:
        tn = int(tile_n)
    tn = max(128, (tn // 128) * 128)                     # lane multiple
    tn = min(tn, pl.cdiv(N, 128) * 128)                  # no larger than needed
    nk = pl.cdiv(N, tn)

    # No extra HBM copy of x: reshape only collapses contiguous trailing dims.
    x2 = x.reshape(B, Cin, N)

    # Fold the 1/N Gram normalization into the conv weight/bias (ReLU commutes
    # with a positive scale).
    scale = 1.0 / float(np.sqrt(N))
    wc = (conv_w.reshape(Cout, Cin).astype(jnp.float32) * scale).astype(mxu_dtype)
    bc = conv_b.reshape(Cout, 1).astype(jnp.float32) * scale

    kernel = functools.partial(_gram_kernel, n=N, tn=tn, mxu_dtype=mxu_dtype)
    r = pl.pallas_call(
        kernel,
        out_shape=jax.ShapeDtypeStruct((B, Cout, Cout), jnp.float32),
        grid_spec=pltpu.PrefetchScalarGridSpec(
            num_scalar_prefetch=0,
            grid=(B, nk),
            in_specs=[
                pl.BlockSpec((1, Cin, tn), lambda b, k: (b, 0, k)),
                pl.BlockSpec((Cout, Cin), lambda b, k: (0, 0)),
                pl.BlockSpec((Cout, 1), lambda b, k: (0, 0)),
            ],
            out_specs=pl.BlockSpec((1, Cout, Cout), lambda b, k: (b, 0, 0)),
            scratch_shapes=[pltpu.VMEM((Cout, Cout), jnp.float32)],  # Gram accumulator
        ),
        compiler_params=pltpu.CompilerParams(
            dimension_semantics=("parallel", "arbitrary"),
            vmem_limit_bytes=(64 if big_vmem else 40) * 1024 * 1024,
        ),
    )(x2, wc, bc)

    # L2 normalize + fc hoisted out of the streaming kernel: one batched
    # (B, C*C) @ (C*C, C) matmul in plain XLA (full MXU occupancy, no fc
    # weight pinned in VMEM during the spatial stream).  Mirrors the
    # reference ordering exactly.
    r_flat = r.reshape(B, Cout * Cout)
    nrm = jnp.maximum(jnp.sqrt(jnp.sum(r_flat * r_flat, axis=1, keepdims=True)), 1e-12)
    r_n = r_flat / nrm
    return r_n @ fc_w.astype(jnp.float32).T + fc_b.astype(jnp.float32)[None, :]


def _reference(x, conv_w, conv_b, fc_w, fc_b):
    """Pure-JAX f32 reference mirroring the PyTorch forward exactly."""
    B, Cin, T, H, W = x.shape
    Cout = conv_w.shape[0]
    N = T * H * W
    wc = conv_w.reshape(Cout, Cin).astype(jnp.float32)
    xf = x.reshape(B, Cin, N).astype(jnp.float32)
    y = jnp.einsum('oc,bcn->bon', wc, xf) + conv_b.astype(jnp.float32)[None, :, None]
    y = jnp.maximum(y, 0.0)
    g = jnp.einsum('bcn,bdn->bcd', y, y) / N
    r = jnp.sqrt(g.reshape(B, Cout * Cout) + 1e-5)
    nrm = jnp.maximum(jnp.sqrt(jnp.sum(r * r, axis=1, keepdims=True)), 1e-12)
    r = r / nrm
    return r @ fc_w.astype(jnp.float32).T + fc_b.astype(jnp.float32)[None, :]


if __name__ == "__main__":
    key = jax.random.PRNGKey(0)
    k_x, k_cw, k_cb, k_fw, k_fb = jax.random.split(key, 5)

    B, Cin, Cout = 2, 4, 8
    T, H, W = 3, 8, 8          # N = 192: not a multiple of 128, so the in-kernel
                               # tail masking runs; tile_n=128 below also exercises
                               # the multi-step k accumulation.

    x = jax.random.normal(k_x, (B, Cin, T, H, W), dtype=jnp.float32)
    conv_w = jax.random.normal(k_cw, (Cout, Cin, 1, 1, 1), dtype=jnp.float32) * 0.2
    conv_b = jax.random.normal(k_cb, (Cout,), dtype=jnp.float32) * 0.1
    fc_w = jax.random.normal(k_fw, (Cout, Cout * Cout), dtype=jnp.float32) * 0.1
    fc_b = jax.random.normal(k_fb, (Cout,), dtype=jnp.float32) * 0.1

    ref = _reference(x, conv_w, conv_b, fc_w, fc_b)

    # Exact-precision path (faithful to the PyTorch f32 forward); small tile to
    # exercise the k-accumulation + masked tail branches.
    out_f32 = bilinear_classify_block(x, conv_w, conv_b, fc_w, fc_b,
                                      mxu_dtype=jnp.float32, tile_n=128)
    out_f32 = jax.block_until_ready(out_f32)
    np.testing.assert_allclose(np.asarray(out_f32), np.asarray(ref),
                               rtol=1e-4, atol=1e-4)

    # Default production path: native-dtype x stream, bf16 MXU feed, f32 accum,
    # bytes-budget tile sizing.
    out_bf16 = bilinear_classify_block(x, conv_w, conv_b, fc_w, fc_b)
    out_bf16 = jax.block_until_ready(out_bf16)
    np.testing.assert_allclose(np.asarray(out_bf16), np.asarray(ref),
                               rtol=5e-2, atol=5e-2)

    print("KERNEL_OK")
</pallas_src>

<mosaic_0001>
module attributes {stable_mosaic.version = 11 : i64} {
  func.func @_gram_kernel(%arg0: i32, %arg1: i32, %arg2: memref<1x4x128xf32, #tpu.memory_space<vmem>>, %arg3: memref<8x4xf32, #tpu.memory_space<vmem>>, %arg4: memref<8x1xf32, #tpu.memory_space<vmem>>, %arg5: memref<1x8x8xf32, #tpu.memory_space<vmem>>, %arg6: memref<8x8xf32, #tpu.memory_space<vmem>>) attributes {dimension_semantics = [#tpu.dimension_semantics<parallel>, #tpu.dimension_semantics<arbitrary>], iteration_bounds = array<i64: 2, 2>, scalar_prefetch = 0 : i64, scratch_operands = 1 : i64, tpu.core_type = #tpu.core_type<tc>, window_params = [{transform_indices = @transform_0, window_bounds = array<i64: 1, 4, 128>}, {pipeline_mode = #tpu.pipeline_mode<synchronous>, transform_indices = @transform_1, window_bounds = array<i64: 8, 4>}, {pipeline_mode = #tpu.pipeline_mode<synchronous>, transform_indices = @transform_2, window_bounds = array<i64: 8, 1>}, {transform_indices = @transform_3, window_bounds = array<i64: 1, 8, 8>}]} {
    %c0_i32 = arith.constant 0 : i32
    %0 = arith.cmpi eq, %arg1, %c0_i32 : i32
    %1 = arith.extui %0 : i1 to i32
    %c0_i32_0 = arith.constant 0 : i32
    %2 = arith.cmpi ne, %1, %c0_i32_0 : i32
    scf.if %2 {
      %cst_13 = arith.constant 0.000000e+00 : f32
      %21 = vector.broadcast %cst_13 : f32 to vector<8x8xf32>
      %c0_14 = arith.constant 0 : index
      %c0_15 = arith.constant 0 : index
      %22 = vector.load %arg6[%c0_14, %c0_15] : memref<8x8xf32, #tpu.memory_space<vmem>>, vector<8x8xf32>
      tpu.vector_store %arg6[%c0_14, %c0_15], %21 {strides = array<i32>} : memref<8x8xf32, #tpu.memory_space<vmem>>, vector<8x8xf32>,
    } else {
    }
    %c0 = arith.constant 0 : index
    %c0_1 = arith.constant 0 : index
    %c0_2 = arith.constant 0 : index
    %3 = vector.load %arg2[%c0, %c0_1, %c0_2] : memref<1x4x128xf32, #tpu.memory_space<vmem>>, vector<1x4x128xf32>
    %4 = vector.shape_cast %3 : vector<1x4x128xf32> to vector<4x128xf32>
    %c0_3 = arith.constant 0 : index
    %c0_4 = arith.constant 0 : index
    %5 = vector.load %arg3[%c0_3, %c0_4] : memref<8x4xf32, #tpu.memory_space<vmem>>, vector<8x4xf32>
    %cst = arith.constant dense<0.000000e+00> : vector<8x128xf32>
    %6 = tpu.matmul %5, %4, %cst {dimension_numbers = #tpu.dot_dimension_numbers<[1], [0], [0], [1], [0, 0, 1, 1], [], []>} : vector<8x4xf32>, vector<4x128xf32>, vector<8x128xf32> -> vector<8x128xf32>
    %c0_5 = arith.constant 0 : index
    %c0_6 = arith.constant 0 : index
    %7 = vector.load %arg4[%c0_5, %c0_6] : memref<8x1xf32, #tpu.memory_space<vmem>>, vector<8x1xf32>
    %8 = vector.broadcast %7 : vector<8x1xf32> to vector<8x128xf32>
    %9 = arith.addf %6, %8 : vector<8x128xf32>
    %cst_7 = arith.constant 0.000000e+00 : f32
    %10 = vector.broadcast %cst_7 : f32 to vector<8x128xf32>
    %11 = arith.maximumf %9, %10 : vector<8x128xf32>
    %c1_i32 = arith.constant 1 : i32
    %12 = arith.cmpi slt, %arg1, %c1_i32 : i32
    %13 = arith.extui %12 : i1 to i32
    %c0_i32_8 = arith.constant 0 : i32
    %14 = arith.cmpi ne, %13, %c0_i32_8 : i32
    scf.if %14 {
      %c0_13 = arith.constant 0 : index
      %c0_14 = arith.constant 0 : index
      %21 = vector.load %arg6[%c0_13, %c0_14] : memref<8x8xf32, #tpu.memory_space<vmem>>, vector<8x8xf32>
      %cst_15 = arith.constant dense<0.000000e+00> : vector<8x8xf32>
      %22 = tpu.matmul %11, %11, %cst_15 {dimension_numbers = #tpu.dot_dimension_numbers<[1], [1], [0], [0], [0, 0, 1, 0], [], []>} : vector<8x128xf32>, vector<8x128xf32>, vector<8x8xf32> -> vector<8x8xf32>
      %23 = arith.addf %21, %22 : vector<8x8xf32>
      %c0_16 = arith.constant 0 : index
      %c0_17 = arith.constant 0 : index
      %24 = vector.load %arg6[%c0_16, %c0_17] : memref<8x8xf32, #tpu.memory_space<vmem>>, vector<8x8xf32>
      tpu.vector_store %arg6[%c0_16, %c0_17], %23 {strides = array<i32>} : memref<8x8xf32, #tpu.memory_space<vmem>>, vector<8x8xf32>,
    } else {
    }
    %c1_i32_9 = arith.constant 1 : i32
    %15 = arith.cmpi eq, %arg1, %c1_i32_9 : i32
    %16 = arith.extui %15 : i1 to i32
    %c0_i32_10 = arith.constant 0 : i32
    %17 = arith.cmpi ne, %16, %c0_i32_10 : i32
    scf.if %17 {
      %21 = tpu.iota {dimensions = array<i32: 1>} : vector<1x128xi32>
      %c64_i32 = arith.constant 64 : i32
      %22 = vector.broadcast %c64_i32 : i32 to vector<1x128xi32>
      %23 = arith.cmpi slt, %21, %22 : vector<1x128xi32>
      %cst_13 = arith.constant 0.000000e+00 : f32
      %24 = vector.shape_cast %23 : vector<1x128xi1> to vector<1x128xi1>
      %25 = vector.broadcast %24 : vector<1x128xi1> to vector<8x128xi1>
      %26 = vector.broadcast %cst_13 : f32 to vector<8x128xf32>
      %27 = arith.select %25, %11, %26 : vector<8x128xi1>, vector<8x128xf32>
      %c0_14 = arith.constant 0 : index
      %c0_15 = arith.constant 0 : index
      %28 = vector.load %arg6[%c0_14, %c0_15] : memref<8x8xf32, #tpu.memory_space<vmem>>, vector<8x8xf32>
      %cst_16 = arith.constant dense<0.000000e+00> : vector<8x8xf32>
      %29 = tpu.matmul %27, %27, %cst_16 {dimension_numbers = #tpu.dot_dimension_numbers<[1], [1], [0], [0], [0, 0, 1, 0], [], []>} : vector<8x128xf32>, vector<8x128xf32>, vector<8x8xf32> -> vector<8x8xf32>
      %30 = arith.addf %28, %29 : vector<8x8xf32>
      %c0_17 = arith.constant 0 : index
      %c0_18 = arith.constant 0 : index
      %31 = vector.load %arg6[%c0_17, %c0_18] : memref<8x8xf32, #tpu.memory_space<vmem>>, vector<8x8xf32>
      tpu.vector_store %arg6[%c0_17, %c0_18], %30 {strides = array<i32>} : memref<8x8xf32, #tpu.memory_space<vmem>>, vector<8x8xf32>,
    } else {
    }
    %c1_i32_11 = arith.constant 1 : i32
    %18 = arith.cmpi eq, %arg1, %c1_i32_11 : i32
    %19 = arith.extui %18 : i1 to i32
    %c0_i32_12 = arith.constant 0 : i32
    %20 = arith.cmpi ne, %19, %c0_i32_12 : i32
    scf.if %20 {
      %c0_13 = arith.constant 0 : index
      %c0_14 = arith.constant 0 : index
      %21 = vector.load %arg6[%c0_13, %c0_14] : memref<8x8xf32, #tpu.memory_space<vmem>>, vector<8x8xf32>
      %cst_15 = arith.constant 9.99999974E-6 : f32
      %22 = vector.broadcast %cst_15 : f32 to vector<8x8xf32>
      %23 = arith.addf %21, %22 : vector<8x8xf32>
      %24 = math.sqrt %23 : vector<8x8xf32>
      %c0_16 = arith.constant 0 : index
      %c0_17 = arith.constant 0 : index
      %c0_18 = arith.constant 0 : index
      %25 = vector.load %arg5[%c0_16, %c0_17, %c0_18] : memref<1x8x8xf32, #tpu.memory_space<vmem>>, vector<1x8x8xf32>
      %26 = vector.shape_cast %25 : vector<1x8x8xf32> to vector<8x8xf32>
      %27 = vector.shape_cast %24 : vector<8x8xf32> to vector<1x8x8xf32>
      tpu.vector_store %arg5[%c0_16, %c0_17, %c0_18], %27 {strides = array<i32>} : memref<1x8x8xf32, #tpu.memory_space<vmem>>, vector<1x8x8xf32>,
    } else {
    }
    return
  }
  func.func @transform_0(%arg0: i32, %arg1: i32) -> (i32, i32, i32) {
    %c0_i32 = arith.constant 0 : i32
    %c0_i32_0 = arith.constant 0 : i32
    return %arg0, %c0_i32, %arg1 : i32, i32, i32
  }
  func.func @transform_1(%arg0: i32, %arg1: i32) -> (i32, i32) {
    %c0_i32 = arith.constant 0 : i32
    %c0_i32_0 = arith.constant 0 : i32
    %c0_i32_1 = arith.constant 0 : i32
    return %c0_i32, %c0_i32_0 : i32, i32
  }
  func.func @transform_2(%arg0: i32, %arg1: i32) -> (i32, i32) {
    %c0_i32 = arith.constant 0 : i32
    %c0_i32_0 = arith.constant 0 : i32
    %c0_i32_1 = arith.constant 0 : i32
    return %c0_i32, %c0_i32_0 : i32, i32
  }
  func.func @transform_3(%arg0: i32, %arg1: i32) -> (i32, i32, i32) {
    %c0_i32 = arith.constant 0 : i32
    %c0_i32_0 = arith.constant 0 : i32
    %c0_i32_1 = arith.constant 0 : i32
    return %arg0, %c0_i32, %c0_i32_0 : i32, i32, i32
  }
}

</mosaic_0001>

<llo_original>
// kernel: tpu_custom_call.1
$region0: #{tpu_custom_call.1}
  #allocation0 [shape = 'u32[]', space=smem, size = 0x4, offset = 0x4, fixed_abs, tag = 'smem constant byte address 0x4 - core index']
  #allocation1 [shape = 'u32[144,128]{1,0:T(1,128)}', space=vmem, size = 0x12000, scoped, tag = 'internal scratch']
  #allocation2 [shape = 'f32[8,8]{1,0:T(8,128)}', space=vmem, size = 0x1000, scoped, tag = 'scratch operand']
  %s0 = inlined_call_operand.vmem [shape: f32[2,4,192], index: 0, kind: input, shape index: {}]
  %s1 = inlined_call_operand.vmem [shape: f32[8,4], index: 1, kind: input, shape index: {}]
  %s2 = inlined_call_operand.vmem [shape: f32[8,1], index: 2, kind: input, shape index: {}]
  %s3 = inlined_call_operand.hbm [shape: f32[2,8,8], index: 3, kind: output, shape index: {}]
  %s4 = sld [smem:[#allocation0]]
  $region57: #{tpu_custom_call.1} parent=0
    _
  %s6 = ssub.s32 1, %s4
  %s7 = scalar_select 0, %s6, %s4
  $region1: #{tpu_custom_call.1} parent=0
    #allocation3 [shape = 'u8[8192]{0}', space=vmem, size = 0x2000, scoped, tag = 'output window, operand 0']
    #allocation4 [shape = 's32[2]{0}', space=sflag, size = 0x8, scoped, tag = 'scoped memory for tpu_custom_call.1']
    %8 = vsyncpa [#allocation4], 0
    %s9 = scalar_lea.sflag [#allocation4], 1
    %10 = vsyncpa %s9, 0
    loop: start=0, step=1, limit=6
    $region2: #{tpu_custom_call.1} parent=1 // loop_pre_header
      _
    $region3: #{tpu_custom_call.1} parent=1 // loop_header
      %s12 = sphi 0, %s16
      %p13 = scmp.ge.s32.totalorder %s12, 6
      %s19 = sphi 0, %s31
      %s20 = sphi 0, %s27
      %s21 = sphi 0, %s19
      %s22 = sphi 0, %s20
      %s23 = sphi 0, %s21
      %s24 = sphi 0, %s22
      %s36 = sphi 0, %s38
      %s39 = sphi 0, %s36
      %s40 = sphi 0, %s39
      %s56 = sphi 0, %s40
      %s60 = sphi 0, %s60
      %s62 = sphi 0, %s60
      %s63 = sphi 0, %s62
      %s77 = sphi 0, %s63
      %s81 = sphi 0, %s81
      %s83 = sphi 0, %s81
      %s84 = sphi 0, %s83
      %s98 = sphi 0, %s84
      %s104 = sphi 0, %s106
      %s107 = sphi 0, %s104
      %s108 = sphi 0, %s107
      %s124 = sphi 0, %s108
    $region4: #{tpu_custom_call.1} parent=1 // loop_header_branch
      %15 = sbr.rel (%p13) target = $region8
    $region5: #{tpu_custom_call.1} parent=1 // loop_body
      %s17 = ssub.s32 %s12, 1
      %s18 = ssub.s32 %s12, 2
      %s25 = sadd.s32 1, %s20
      %p26 = scmp.ge.s32.totalorder %s25, 2
      %s27 = scalar_select %p26, 0, %s25
      %s28 = sadd.s32 1, %s19
      %s29 = scalar_select %p26, %s28, %s19
      %p30 = scmp.ge.s32.totalorder %s29, 2
      %s31 = scalar_select %p30, 0, %s29
      %s32 = ssub.s32 %s19, %s31
      %s33 = ssub.s32 %s20, %s27
      %s34 = sor.u32 %s32, %s33
      %p35 = scmp.eq.s32.totalorder %s34, 0
      %s37 = sadd.s32 %s36, 1
      %s38 = scalar_select %p35, %s36, %s37
      %p41 = pneg %p35
      %p42 = scmp.eq.s32.totalorder %s12, 3
      %p43 = por %p41, %p42
      %p44 = scmp.ne.s32.totalorder %s36, %s39
      %p45 = scmp.eq.s32.totalorder %s12, 0
      %p46 = por %p44, %p45
      %p47 = scmp.ne.s32.totalorder %s36, %s39
      %p48 = scmp.eq.s32.totalorder %s17, 3
      %p49 = por %p47, %p48
      %p50 = scmp.ne.s32.totalorder %s39, %s40
      %p51 = scmp.eq.s32.totalorder %s17, 0
      %p52 = por %p50, %p51
      %p53 = scmp.ne.s32.totalorder %s39, %s40
      %p54 = scmp.eq.s32.totalorder %s18, 3
      %p55 = por %p53, %p54
      %p57 = scmp.ne.s32.totalorder %s40, %s56
      %p58 = scmp.eq.s32.totalorder %s18, 0
      %p59 = por %p57, %p58
      %s61 = sadd.s32 %s60, 1
      %p64 = scmp.eq.s32.totalorder %s12, 3
      %p65 = scmp.ne.s32.totalorder %s60, %s62
      %p66 = scmp.eq.s32.totalorder %s12, 0
      %p67 = por %p65, %p66
      %p68 = scmp.ne.s32.totalorder %s60, %s62
      %p69 = scmp.eq.s32.totalorder %s17, 3
      %p70 = por %p68, %p69
      %p71 = scmp.ne.s32.totalorder %s62, %s63
      %p72 = scmp.eq.s32.totalorder %s17, 0
      %p73 = por %p71, %p72
      %p74 = scmp.ne.s32.totalorder %s62, %s63
      %p75 = scmp.eq.s32.totalorder %s18, 3
      %p76 = por %p74, %p75
      %p78 = scmp.ne.s32.totalorder %s63, %s77
      %p79 = scmp.eq.s32.totalorder %s18, 0
      %p80 = por %p78, %p79
      %s82 = sadd.s32 %s81, 1
      %p85 = scmp.eq.s32.totalorder %s12, 3
      %p86 = scmp.ne.s32.totalorder %s81, %s83
      %p87 = scmp.eq.s32.totalorder %s12, 0
      %p88 = por %p86, %p87
      %p89 = scmp.ne.s32.totalorder %s81, %s83
      %p90 = scmp.eq.s32.totalorder %s17, 3
      %p91 = por %p89, %p90
      %p92 = scmp.ne.s32.totalorder %s83, %s84
      %p93 = scmp.eq.s32.totalorder %s17, 0
      %p94 = por %p92, %p93
      %p95 = scmp.ne.s32.totalorder %s83, %s84
      %p96 = scmp.eq.s32.totalorder %s18, 3
      %p97 = por %p95, %p96
      %p99 = scmp.ne.s32.totalorder %s84, %s98
      %p100 = scmp.eq.s32.totalorder %s18, 0
      %p101 = por %p99, %p100
      %s102 = ssub.s32 %s19, %s31
      %p103 = scmp.eq.s32.totalorder %s102, 0
      %s105 = sadd.s32 %s104, 1
      %s106 = scalar_select %p103, %s104, %s105
      %p109 = pneg %p103
      %p110 = scmp.eq.s32.totalorder %s12, 3
      %p111 = por %p109, %p110
      %p112 = scmp.ne.s32.totalorder %s104, %s107
      %p113 = scmp.eq.s32.totalorder %s12, 0
      %p114 = por %p112, %p113
      %p115 = scmp.ne.s32.totalorder %s104, %s107
      %p116 = scmp.eq.s32.totalorder %s17, 3
      %p117 = por %p115, %p116
      %p118 = scmp.ne.s32.totalorder %s107, %s108
      %p119 = scmp.eq.s32.totalorder %s17, 0
      %p120 = por %p118, %p119
      %p121 = scmp.ne.s32.totalorder %s107, %s108
      %p122 = scmp.eq.s32.totalorder %s18, 3
      %p123 = por %p121, %p122
      %p125 = scmp.ne.s32.totalorder %s108, %s124
      %p126 = scmp.eq.s32.totalorder %s18, 0
      %p127 = por %p125, %p126
      %p128 = scmp.le.s32.totalorder 1, %s12
      %p129 = scmp.lt.s32.totalorder %s12, 5
      %p130 = pnand %p128, %p129
      %p131 = pneg %p130
      // Predicated region
      $region9: #{tpu_custom_call.1} parent=5 // pred_check
        _
      $region10: #{tpu_custom_call.1} parent=5 // pred_check_branch
        %133 = sbr.rel (%p130) target = $region12
      $region11: #{tpu_custom_call.1} parent=5 // pred_region
        %s134 = ssub.s32 %s12, 1
        // Predicated region
        $region13: #{tpu_custom_call.1} parent=11 // pred_check
          %p135 = pneg %p73
        $region14: #{tpu_custom_call.1} parent=11 // pred_check_branch
          %137 = sbr.rel (%p135) target = $region16
        $region15: #{tpu_custom_call.1} parent=11 // pred_region
          _
        $region16: #{tpu_custom_call.1} parent=11 // pred_fallthru
          _
        // Predicated region
        $region17: #{tpu_custom_call.1} parent=11 // pred_check
          %p138 = pneg %p94
        $region18: #{tpu_custom_call.1} parent=11 // pred_check_branch
          %140 = sbr.rel (%p138) target = $region20
        $region19: #{tpu_custom_call.1} parent=11 // pred_region
          _
        $region20: #{tpu_custom_call.1} parent=11 // pred_fallthru
          _
      $region12: #{tpu_custom_call.1} parent=5 // pred_fallthru
        _
      %p141 = scmp.lt.s32.totalorder %s12, 4
      // Predicated region
      $region21: #{tpu_custom_call.1} parent=5 // pred_check
        %p142 = pneg %p141
      $region22: #{tpu_custom_call.1} parent=5 // pred_check_branch
        %144 = sbr.rel (%p142) target = $region24
      $region23: #{tpu_custom_call.1} parent=5 // pred_region
        // Predicated region
        $region25: #{tpu_custom_call.1} parent=23 // pred_check
          %p145 = pneg %p46
        $region26: #{tpu_custom_call.1} parent=23 // pred_check_branch
          %147 = sbr.rel (%p145) target = $region28
        $region27: #{tpu_custom_call.1} parent=23 // pred_region
          %p148 = scmp.lt.s32.totalorder %s19, 1
          %s149 = scalar_select %p148, %s19, 1
          %p150 = scmp.lt.s32.totalorder %s20, 1
          %s151 = scalar_select %p150, %s20, 1
          %s152 = smul.addr %s149, 2
          %s153 = sadd.s32 %s151, %s152
          %s154 = smul.addr %s153, 4
          %s155 = scalar_lea.vmem %s0, %s154
        $region28: #{tpu_custom_call.1} parent=23 // pred_fallthru
          _
      $region24: #{tpu_custom_call.1} parent=5 // pred_fallthru
        _
      %p156 = scmp.le.s32.totalorder 1, %s12
      %p157 = scmp.lt.s32.totalorder %s12, 5
      %p158 = pnand %p156, %p157
      %p159 = pneg %p158
      // Predicated region
      $region29: #{tpu_custom_call.1} parent=5 // pred_check
        _
      $region30: #{tpu_custom_call.1} parent=5 // pred_check_branch
        %161 = sbr.rel (%p158) target = $region32
      $region31: #{tpu_custom_call.1} parent=5 // pred_region
        %s162 = ssub.s32 %s12, 1
        %p163 = scmp.lt.s32.totalorder %s21, 1
        %s164 = scalar_select %p163, %s21, 1
        %p165 = scmp.lt.s32.totalorder %s22, 1
        %s166 = scalar_select %p165, %s22, 1
        %s167 = smul.addr %s164, 2
        %s168 = sadd.s32 %s166, %s167
        %s169 = smul.addr %s168, 4
        %s170 = scalar_lea.vmem %s0, %s169
        %p171 = pneg %p52
        %p172 = pneg %p49
        %p173 = pneg %p73
        %p174 = pneg %p70
        %p175 = pneg %p94
        %p176 = pneg %p91
        %p177 = pneg %p120
        %p178 = pneg %p117
        %s179 = sand.u32 %s107, 1
        %s180 = scalar_lea.sflag [#allocation4], %s179
        %s181 = sand.u32 %s107, 1
        %s182 = smul.addr %s181, 8
        %s183 = scalar_lea.vmem [#allocation3], %s182
        %p184 = scmp.lt.s32.totalorder %s21, 1
        %s185 = scalar_select %p184, %s21, 1
        %p186 = scmp.lt.s32.totalorder %s22, 1
        %s187 = scalar_select %p186, %s22, 1
        %s188 = smul.addr %s185, 2
        %s189 = sadd.s32 %s187, %s188
        %s190 = smul.addr %s189, 4
        %s191 = scalar_lea.vmem %s0, %s190
        %p192 = scmp.eq.s32.totalorder %s22, 0
        // Predicated region
        $region33: #{tpu_custom_call.1} parent=31 // pred_check
          %p193 = pneg %p192
        $region34: #{tpu_custom_call.1} parent=31 // pred_check_branch
          %195 = sbr.rel (%p193) target = $region36
        $region35: #{tpu_custom_call.1} parent=31 // pred_region
          %vm196 = vcmask 64512
          %197 = vst.msk [vmem:[#allocation2] sm:$0xff] %vm196, 0.0
        $region36: #{tpu_custom_call.1} parent=31 // pred_fallthru
          _
        %v198 = vld [vmem:[%s191] sm:$0xf]
        %v199 = vld [vmem:[%s1] sm:$0xff]
        %v200 = vld [vmem:[%s2] sm:$0xff]
        %202 = vset.pattern.permute.xlu0 0
        %203 = vperm.xlu0 %202, %v200
        %v204 = vpop.permute.xlu0 %203
        %vm206 = vcmask 31744
        %v208 = vsel %vm206, %v199, 0
        %vm210 = vcmask 1043456
        %v212 = vsel %vm210, %v198, 0
        %214 = vmatprep.subr.mxu0 0.0
        %215 = vmatpush1.msra.mxu0 %v212
        %216 = vmatprep.subr.mxu0 0.0
        %217 = vmatpush1.msra.mxu0 0.0
        %218 = vmatprep.subr.mxu0 0.0
        %219 = vmatpush1.msra.mxu0 0.0
        %220 = vmatprep.subr.mxu0 0.0
        %221 = vmatpush1.msra.mxu0 0.0
        %222 = vmatprep.subr.mxu0 0.0
        %223 = vmatpush1.msra.mxu0 0.0
        %224 = vmatprep.subr.mxu0 0.0
        %225 = vmatpush1.msra.mxu0 0.0
        %226 = vmatprep.subr.mxu0 0.0
        %227 = vmatpush1.msra.mxu0 0.0
        %228 = vmatprep.subr.mxu0 0.0
        %229 = vmatpush1.msra.mxu0 0.0
        %230 = vmatprep.subr.mxu0 0.0
        %231 = vmatpush1.msra.mxu0 0.0
        %232 = vmatprep.subr.mxu0 0.0
        %233 = vmatpush1.msra.mxu0 0.0
        %234 = vmatprep.subr.mxu0 0.0
        %235 = vmatpush1.msra.mxu0 0.0
        %236 = vmatprep.subr.mxu0 0.0
        %237 = vmatpush1.msra.mxu0 0.0
        %238 = vmatprep.subr.mxu0 0.0
        %239 = vmatpush1.msra.mxu0 0.0
        %240 = vmatprep.subr.mxu0 0.0
        %241 = vmatpush1.msra.mxu0 0.0
        %242 = vmatprep.subr.mxu0 0.0
        %243 = vmatpush1.msra.mxu0 0.0
        %244 = vmatprep.subr.mxu0 0.0
        %245 = vmatpush1.msra.mxu0 0.0
        %246 = vmatprep.subr.mxu0 0.0
        %247 = vmatpush1.msra.mxu0 0.0
        %248 = vmatprep.subr.mxu0 0.0
        %249 = vmatpush1.msra.mxu0 0.0
        %250 = vmatprep.subr.mxu0 0.0
        %251 = vmatpush1.msra.mxu0 0.0
        %252 = vmatprep.subr.mxu0 0.0
        %253 = vmatpush1.msra.mxu0 0.0
        %254 = vmatprep.subr.mxu0 0.0
        %255 = vmatpush1.msra.mxu0 0.0
        %256 = vmatprep.subr.mxu0 0.0
        %257 = vmatpush1.msra.mxu0 0.0
        %258 = vmatprep.subr.mxu0 0.0
        %259 = vmatpush1.msra.mxu0 0.0
        %260 = vmatprep.subr.mxu0 0.0
        %261 = vmatpush1.msra.mxu0 0.0
        %262 = vmatprep.subr.mxu0 0.0
        %263 = vmatpush1.msra.mxu0 0.0
        %264 = vmatprep.subr.mxu0 0.0
        %265 = vmatpush1.msra.mxu0 0.0
        %266 = vmatprep.subr.mxu0 0.0
        %267 = vmatpush1.msra.mxu0 0.0
        %268 = vmatprep.subr.mxu0 0.0
        %269 = vmatpush1.msra.mxu0 0.0
        %270 = vmatprep.subr.mxu0 0.0
        %271 = vmatpush1.msra.mxu0 0.0
        %272 = vmatprep.subr.mxu0 0.0
        %273 = vmatpush1.msra.mxu0 0.0
        %274 = vmatprep.subr.mxu0 0.0
        %275 = vmatpush1.msra.mxu0 0.0
        %276 = vmatprep.subr.mxu0 0.0
        %277 = vmatpush1.msra.mxu0 0.0
        %278 = vmatprep.mubr.f32.mxu0 0.0
        %279 = vmatmul.mubr.f32.gmra.mrb[0].mxu0 %v208
        %v280 = vpop.f32.mrb[0].mxu0
        %v281 = vadd.f32 %v204, %v280
        %v282 = vpop.f32.mrb[0].mxu0
        %283 = vdwg.mxu0
        %v284 = vmax.f32 %v281, 0.0
        %p285 = scmp.lt.s32.totalorder %s22, 1
        // Predicated region
        $region37: #{tpu_custom_call.1} parent=31 // pred_check
          %p286 = pneg %p285
        $region38: #{tpu_custom_call.1} parent=31 // pred_check_branch
          %288 = sbr.rel (%p286) target = $region40
        $region39: #{tpu_custom_call.1} parent=31 // pred_region
          %v289 = vld [vmem:[#allocation2] sm:$0xff]
          %290 = vmatprep.subr.mxu0 0.0
          %291 = vmatpush1.xpose.msra.mxu0 %v284
          %292 = vmatprep.subr.mxu0 0.0
          %293 = vmatpush1.xpose.msra.mxu0 0.0
          %294 = vmatprep.subr.mxu0 0.0
          %295 = vmatpush1.xpose.msra.mxu0 0.0
          %296 = vmatprep.subr.mxu0 0.0
          %297 = vmatpush1.xpose.msra.mxu0 0.0
          %298 = vmatprep.subr.mxu0 0.0
          %299 = vmatpush1.xpose.msra.mxu0 0.0
          %300 = vmatprep.subr.mxu0 0.0
          %301 = vmatpush1.xpose.msra.mxu0 0.0
          %302 = vmatprep.subr.mxu0 0.0
          %303 = vmatpush1.xpose.msra.mxu0 0.0
          %304 = vmatprep.subr.mxu0 0.0
          %305 = vmatpush1.xpose.msra.mxu0 0.0
          %306 = vmatprep.subr.mxu0 0.0
          %307 = vmatpush1.xpose.msra.mxu0 0.0
          %308 = vmatprep.subr.mxu0 0.0
          %309 = vmatpush1.xpose.msra.mxu0 0.0
          %310 = vmatprep.subr.mxu0 0.0
          %311 = vmatpush1.xpose.msra.mxu0 0.0
          %312 = vmatprep.subr.mxu0 0.0
          %313 = vmatpush1.xpose.msra.mxu0 0.0
          %314 = vmatprep.subr.mxu0 0.0
          %315 = vmatpush1.xpose.msra.mxu0 0.0
          %316 = vmatprep.subr.mxu0 0.0
          %317 = vmatpush1.xpose.msra.mxu0 0.0
          %318 = vmatprep.subr.mxu0 0.0
          %319 = vmatpush1.xpose.msra.mxu0 0.0
          %320 = vmatprep.subr.mxu0 0.0
          %321 = vmatpush1.xpose.msra.mxu0 0.0
          %322 = vmatprep.subr.mxu0 0.0
          %323 = vmatpush1.xpose.msra.mxu0 0.0
          %324 = vmatprep.subr.mxu0 0.0
          %325 = vmatpush1.xpose.msra.mxu0 0.0
          %326 = vmatprep.subr.mxu0 0.0
          %327 = vmatpush1.xpose.msra.mxu0 0.0
          %328 = vmatprep.subr.mxu0 0.0
          %329 = vmatpush1.xpose.msra.mxu0 0.0
          %330 = vmatprep.subr.mxu0 0.0
          %331 = vmatpush1.xpose.msra.mxu0 0.0
          %332 = vmatprep.subr.mxu0 0.0
          %333 = vmatpush1.xpose.msra.mxu0 0.0
          %334 = vmatprep.subr.mxu0 0.0
          %335 = vmatpush1.xpose.msra.mxu0 0.0
          %336 = vmatprep.subr.mxu0 0.0
          %337 = vmatpush1.xpose.msra.mxu0 0.0
          %338 = vmatprep.subr.mxu0 0.0
          %339 = vmatpush1.xpose.msra.mxu0 0.0
          %340 = vmatprep.subr.mxu0 0.0
          %341 = vmatpush1.xpose.msra.mxu0 0.0
          %342 = vmatprep.subr.mxu0 0.0
          %343 = vmatpush1.xpose.msra.mxu0 0.0
          %344 = vmatprep.subr.mxu0 0.0
          %345 = vmatpush1.xpose.msra.mxu0 0.0
          %346 = vmatprep.subr.mxu0 0.0
          %347 = vmatpush1.xpose.msra.mxu0 0.0
          %348 = vmatprep.subr.mxu0 0.0
          %349 = vmatpush1.xpose.msra.mxu0 0.0
          %350 = vmatprep.subr.mxu0 0.0
          %351 = vmatpush1.xpose.msra.mxu0 0.0
          %352 = vmatprep.subr.mxu0 0.0
          %353 = vmatpush1.xpose.msra.mxu0 0.0
          %354 = vmatprep.mubr.f32.mxu0 0.0
          %355 = vmatmul.mubr.f32.gmra.mrb[0].mxu0 %v284
          %v356 = vpop.f32.mrb[0].mxu0
          %v357 = vadd.f32 0.0, %v356
          %v358 = vpop.f32.mrb[0].mxu0
          %359 = vdwg.mxu0
          %v360 = vadd.f32 %v289, %v357
          %vm361 = vcmask 64512
          %362 = vst.msk [vmem:[#allocation2] sm:$0xff] %vm361, %v360
        $region40: #{tpu_custom_call.1} parent=31 // pred_fallthru
          _
        %p363 = scmp.eq.s32.totalorder %s22, 1
        // Predicated region
        $region41: #{tpu_custom_call.1} parent=31 // pred_check
          %p364 = pneg %p363
        $region42: #{tpu_custom_call.1} parent=31 // pred_check_branch
          %366 = sbr.rel (%p364) target = $region44
        $region43: #{tpu_custom_call.1} parent=31 // pred_region
          %v367 = vlaneseq
          %v368 = vand.u32 %v367, 127
          %vm369 = vcmp.lt.s32.totalorder %v368, 64
          %v370 = vsel %vm369, 1, 0
          %vm371 = vcmp.eq.s32.totalorder %v370, 1
          %v372 = vsel %vm371, %v284, 0.0
          %v373 = vld [vmem:[#allocation2] sm:$0xff]
          %374 = vmatprep.subr.mxu0 0.0
          %375 = vmatpush1.xpose.msra.mxu0 %v372
          %376 = vmatprep.subr.mxu0 0.0
          %377 = vmatpush1.xpose.msra.mxu0 0.0
          %378 = vmatprep.subr.mxu0 0.0
          %379 = vmatpush1.xpose.msra.mxu0 0.0
          %380 = vmatprep.subr.mxu0 0.0
          %381 = vmatpush1.xpose.msra.mxu0 0.0
          %382 = vmatprep.subr.mxu0 0.0
          %383 = vmatpush1.xpose.msra.mxu0 0.0
          %384 = vmatprep.subr.mxu0 0.0
          %385 = vmatpush1.xpose.msra.mxu0 0.0
          %386 = vmatprep.subr.mxu0 0.0
          %387 = vmatpush1.xpose.msra.mxu0 0.0
          %388 = vmatprep.subr.mxu0 0.0
          %389 = vmatpush1.xpose.msra.mxu0 0.0
          %390 = vmatprep.subr.mxu0 0.0
          %391 = vmatpush1.xpose.msra.mxu0 0.0
          %392 = vmatprep.subr.mxu0 0.0
          %393 = vmatpush1.xpose.msra.mxu0 0.0
          %394 = vmatprep.subr.mxu0 0.0
          %395 = vmatpush1.xpose.msra.mxu0 0.0
          %396 = vmatprep.subr.mxu0 0.0
          %397 = vmatpush1.xpose.msra.mxu0 0.0
          %398 = vmatprep.subr.mxu0 0.0
          %399 = vmatpush1.xpose.msra.mxu0 0.0
          %400 = vmatprep.subr.mxu0 0.0
          %401 = vmatpush1.xpose.msra.mxu0 0.0
          %402 = vmatprep.subr.mxu0 0.0
          %403 = vmatpush1.xpose.msra.mxu0 0.0
          %404 = vmatprep.subr.mxu0 0.0
          %405 = vmatpush1.xpose.msra.mxu0 0.0
          %406 = vmatprep.subr.mxu0 0.0
          %407 = vmatpush1.xpose.msra.mxu0 0.0
          %408 = vmatprep.subr.mxu0 0.0
          %409 = vmatpush1.xpose.msra.mxu0 0.0
          %410 = vmatprep.subr.mxu0 0.0
          %411 = vmatpush1.xpose.msra.mxu0 0.0
          %412 = vmatprep.subr.mxu0 0.0
          %413 = vmatpush1.xpose.msra.mxu0 0.0
          %414 = vmatprep.subr.mxu0 0.0
          %415 = vmatpush1.xpose.msra.mxu0 0.0
          %416 = vmatprep.subr.mxu0 0.0
          %417 = vmatpush1.xpose.msra.mxu0 0.0
          %418 = vmatprep.subr.mxu0 0.0
          %419 = vmatpush1.xpose.msra.mxu0 0.0
          %420 = vmatprep.subr.mxu0 0.0
          %421 = vmatpush1.xpose.msra.mxu0 0.0
          %422 = vmatprep.subr.mxu0 0.0
          %423 = vmatpush1.xpose.msra.mxu0 0.0
          %424 = vmatprep.subr.mxu0 0.0
          %425 = vmatpush1.xpose.msra.mxu0 0.0
          %426 = vmatprep.subr.mxu0 0.0
          %427 = vmatpush1.xpose.msra.mxu0 0.0
          %428 = vmatprep.subr.mxu0 0.0
          %429 = vmatpush1.xpose.msra.mxu0 0.0
          %430 = vmatprep.subr.mxu0 0.0
          %431 = vmatpush1.xpose.msra.mxu0 0.0
          %432 = vmatprep.subr.mxu0 0.0
          %433 = vmatpush1.xpose.msra.mxu0 0.0
          %434 = vmatprep.subr.mxu0 0.0
          %435 = vmatpush1.xpose.msra.mxu0 0.0
          %436 = vmatprep.subr.mxu0 0.0
          %437 = vmatpush1.xpose.msra.mxu0 0.0
          %438 = vmatprep.mubr.f32.mxu0 0.0
          %439 = vmatmul.mubr.f32.gmra.mrb[0].mxu0 %v372
          %v440 = vpop.f32.mrb[0].mxu0
          %v441 = vadd.f32 0.0, %v440
          %v442 = vpop.f32.mrb[0].mxu0
          %443 = vdwg.mxu0
          %v444 = vadd.f32 %v373, %v441
          %vm445 = vcmask 64512
          %446 = vst.msk [vmem:[#allocation2] sm:$0xff] %vm445, %v444
          %v447 = vld [vmem:[#allocation2] sm:$0xff]
          %v448 = vadd.f32 %v447, 1e-05
          %v449 = vrsqrt.pop %v448
          %v450 = vmul.f32 %v448, %v449
          %vm451 = vcmp.eq.f32.partialorder %v448, inf
          %v452 = vsel %vm451, %v448, %v450
          %vm453 = vcmp.eq.f32.partialorder %v448, 0.0
          %v454 = vand.u32 %v448, 2147483648
          %v455 = vsel %vm453, %v454, %v452
          %456 = vst.msk [vmem:[%s183] sm:$0xff] %vm445, %v455
        $region44: #{tpu_custom_call.1} parent=31 // pred_fallthru
          _
        %s457 = sand.u32 %s107, 1
        %s458 = scalar_lea.sflag [#allocation4], %s457
        %s459 = sand.u32 %s107, 1
        %s460 = smul.addr %s459, 8
        %s461 = scalar_lea.vmem [#allocation3], %s460
        // Predicated region
        $region45: #{tpu_custom_call.1} parent=31 // pred_check
          %p462 = pneg %p117
        $region46: #{tpu_custom_call.1} parent=31 // pred_check_branch
          %464 = sbr.rel (%p462) target = $region48
        $region47: #{tpu_custom_call.1} parent=31 // pred_region
          %s466 = ssub.s32 128, 128
          %467 = vsyncadd %s458, %s466
          %s468 = smul.addr %s21, 128
          %s469 = scalar_lea.hbm %s3, %s468
          %s471 = sshll.u32 %s461, 4
          %s472 = int_to_ptr.vmem [resolvable:$true] %s471
          %474 = dma.vmem_to_hbm [thread:$0]  %s472, 128, %s469, %s458
        $region48: #{tpu_custom_call.1} parent=31 // pred_fallthru
          _
      $region32: #{tpu_custom_call.1} parent=5 // pred_fallthru
        _
      %p475 = scmp.le.s32.totalorder 2, %s12
      // Predicated region
      $region49: #{tpu_custom_call.1} parent=5 // pred_check
        %p476 = pneg %p475
      $region50: #{tpu_custom_call.1} parent=5 // pred_check_branch
        %478 = sbr.rel (%p476) target = $region52
      $region51: #{tpu_custom_call.1} parent=5 // pred_region
        %s479 = ssub.s32 %s12, 2
        // Predicated region
        $region53: #{tpu_custom_call.1} parent=51 // pred_check
          %p480 = pneg %p123
        $region54: #{tpu_custom_call.1} parent=51 // pred_check_branch
          %482 = sbr.rel (%p480) target = $region56
        $region55: #{tpu_custom_call.1} parent=51 // pred_region
          %s483 = sand.u32 %s108, 1
          %s484 = scalar_lea.sflag [#allocation4], %s483
          %s485 = sand.u32 %s108, 1
          %s486 = smul.addr %s485, 8
          %s487 = scalar_lea.vmem [#allocation3], %s486
          %488 = dma.done %s484, 128
        $region56: #{tpu_custom_call.1} parent=51 // pred_fallthru
          _
      $region52: #{tpu_custom_call.1} parent=5 // pred_fallthru
        _
    $region6: #{tpu_custom_call.1} parent=1 // loop_footer
      %s16 = sadd.s32 1, %s12
    $region7: #{tpu_custom_call.1} parent=1 // loop_footer_branch
      %11 = sbr.rel target = $region3
    $region8: #{tpu_custom_call.1} parent=1 // loop_exit
      _
    %489 = vsyncpa [#allocation4], 1
    %s490 = scalar_lea.sflag [#allocation4], 1
    %491 = vsyncpa %s490, 1

</llo_original>
